<compile_context>
chip_gen: v7x
topology: tpu7x:2x2x1
jax: 0.10.0
libtpu: 0.0.40
codegen_flags: <defaults>
</compile_context>

<pallas_src>
import functools
import math

import jax
import jax.numpy as jnp
from jax.experimental import pallas as pl
from jax.experimental.pallas import tpu as pltpu

# Small, TPU-friendly synthetic sizes.
N = 64            # number of graph nodes
NFEAT = 32        # nfeat
K = 16            # featuresSelected (global in the original script)
NHID = 32         # nhid
NCLASS = 8        # nclass
DROPOUT_P = 0.5   # module-level `dropout`


def gcn_kernel(x_ref, adj_ref, sw1_ref, w2_ref, mask_ref, out_ref):
    """Fused GCN forward: gc1 -> relu -> dropout -> gc2 -> log_softmax.

    gc1:  adj @ (x @ (S @ W1))   (== ((adj @ (x @ S)) @ W1) by associativity)
    gc2:  adj @ (h @ W2)         (== (adj @ h) @ W2)
    """
    # ---- layer 1: h = adj @ (x @ SW1)
    xw = jnp.dot(x_ref[...], sw1_ref[...], preferred_element_type=jnp.float32)   # (N, NHID)
    h = jnp.dot(adj_ref[...], xw, preferred_element_type=jnp.float32)            # (N, NHID)

    # ---- ReLU
    h = jnp.maximum(h, 0.0)

    # ---- Dropout (inverted scaling already folded into mask; ones in eval mode)
    h = h * mask_ref[...]

    # ---- layer 2: logits = adj @ (h @ W2)  (narrow NCLASS-wide adj contraction)
    hw2 = jnp.dot(h, w2_ref[...], preferred_element_type=jnp.float32)            # (N, NCLASS)
    logits = jnp.dot(adj_ref[...], hw2, preferred_element_type=jnp.float32)      # (N, NCLASS)

    # ---- log_softmax over dim=1
    m = jnp.max(logits, axis=1, keepdims=True)
    z = logits - m
    lse = jnp.log(jnp.sum(jnp.exp(z), axis=1, keepdims=True))
    out_ref[...] = z - lse


@functools.partial(jax.jit, static_argnames=("training",))
def gcn_forward(x, adj, wf, w1, w2, temp, key, *, training=True):
    """GCN.forward(x, adj, temp).

    Gumbel-softmax on WF, the tiny S @ W1 fold, and the dropout mask are computed
    in plain JAX (all tiny); the matmul-heavy fused forward runs in the kernel.
    """
    k_gumbel, k_drop = jax.random.split(key)

    # F.gumbel_softmax(WF, hard=False, tau=temp, dim=0)
    g = jax.random.gumbel(k_gumbel, wf.shape, dtype=wf.dtype)
    s = jax.nn.softmax((wf + g) / temp, axis=0)

    # Fold feature selection into the first weight: (NFEAT, K) @ (K, NHID) -> (NFEAT, NHID)
    sw1 = jnp.dot(s, w1, preferred_element_type=jnp.float32)

    n = x.shape[0]
    nhid = w1.shape[1]
    # TODO(synk): PyTorch's dropout / gumbel RNG streams cannot be bit-matched;
    # we use jax.random (bernoulli / gumbel) instead.
    if training:
        keep = jax.random.bernoulli(k_drop, 1.0 - DROPOUT_P, (n, nhid))
        mask = keep.astype(jnp.float32) * (1.0 / (1.0 - DROPOUT_P))
    else:
        mask = jnp.ones((n, nhid), jnp.float32)

    return pl.pallas_call(
        gcn_kernel,
        out_shape=jax.ShapeDtypeStruct((n, w2.shape[1]), jnp.float32),
        in_specs=[pl.BlockSpec(memory_space=pltpu.MemorySpace.VMEM)] * 5,
        out_specs=pl.BlockSpec(memory_space=pltpu.MemorySpace.VMEM),
    )(x, adj, sw1, w2, mask)


def init_params(key):
    """Deterministic init matching GraphConvolution.reset_parameters."""
    k_wf, k_w1, k_w2 = jax.random.split(key, 3)
    stdv_wf = 1.0 / math.sqrt(K)       # 1/sqrt(WF.size(1))
    stdv_w1 = 1.0 / math.sqrt(NHID)    # 1/sqrt(weight.size(1)) of gc1
    stdv_w2 = 1.0 / math.sqrt(NCLASS)  # 1/sqrt(weight.size(1)) of gc2
    wf = jax.random.uniform(k_wf, (NFEAT, K), jnp.float32, -stdv_wf, stdv_wf)
    w1 = jax.random.uniform(k_w1, (K, NHID), jnp.float32, -stdv_w1, stdv_w1)
    w2 = jax.random.uniform(k_w2, (NHID, NCLASS), jnp.float32, -stdv_w2, stdv_w2)
    return wf, w1, w2


if __name__ == "__main__":
    root = jax.random.PRNGKey(0)
    k_params, k_x, k_adj, k_fwd = jax.random.split(root, 4)

    wf, w1, w2 = init_params(k_params)
    x = jax.random.normal(k_x, (N, NFEAT), jnp.float32)
    # symmetric row-normalized-ish adjacency (synthetic)
    a = jax.random.uniform(k_adj, (N, N), jnp.float32)
    adj = (a + a.T) * 0.5
    adj = adj / jnp.sum(adj, axis=1, keepdims=True)

    temp = 0.5  # gumbel-softmax temperature passed to forward()

    out = gcn_forward(x, adj, wf, w1, w2, temp, k_fwd, training=True)
    out = jax.block_until_ready(out)

    assert out.shape == (N, NCLASS)
    # rows of exp(log_softmax) must sum to 1
    row_sums = jnp.sum(jnp.exp(out), axis=1)
    assert bool(jnp.all(jnp.isfinite(out)))
    assert bool(jnp.allclose(row_sums, 1.0, atol=1e-5))

    # cross-check against a plain-JAX reference with the exact same S and mask
    g_ref = jax.random.gumbel(jax.random.split(k_fwd)[0], wf.shape, dtype=wf.dtype)
    s_ref = jax.nn.softmax((wf + g_ref) / temp, axis=0)
    keep_ref = jax.random.bernoulli(jax.random.split(k_fwd)[1], 1.0 - DROPOUT_P, (N, NHID))
    mask_ref = keep_ref.astype(jnp.float32) * (1.0 / (1.0 - DROPOUT_P))
    h_ref = jnp.maximum(adj @ (x @ s_ref) @ w1, 0.0) * mask_ref
    logits_ref = (adj @ h_ref) @ w2
    ref = jax.nn.log_softmax(logits_ref, axis=1)
    assert bool(jnp.allclose(out, ref, atol=1e-4, rtol=1e-4))

    print("KERNEL_OK")
</pallas_src>

<mosaic_0001>
module attributes {stable_mosaic.version = 11 : i64} {
  func.func @gcn_kernel(%arg0: memref<64x32xf32, #tpu.memory_space<vmem>>, %arg1: memref<64x64xf32, #tpu.memory_space<vmem>>, %arg2: memref<32x32xf32, #tpu.memory_space<vmem>>, %arg3: memref<32x8xf32, #tpu.memory_space<vmem>>, %arg4: memref<64x32xf32, #tpu.memory_space<vmem>>, %arg5: memref<64x8xf32, #tpu.memory_space<vmem>>) attributes {dimension_semantics = [], scalar_prefetch = 0 : i64, scratch_operands = 0 : i64, tpu.core_type = #tpu.core_type<tc>} {
    %c0 = arith.constant 0 : index
    %c0_0 = arith.constant 0 : index
    %0 = vector.load %arg0[%c0, %c0_0] : memref<64x32xf32, #tpu.memory_space<vmem>>, vector<64x32xf32>
    %c0_1 = arith.constant 0 : index
    %c0_2 = arith.constant 0 : index
    %1 = vector.load %arg2[%c0_1, %c0_2] : memref<32x32xf32, #tpu.memory_space<vmem>>, vector<32x32xf32>
    %cst = arith.constant dense<0.000000e+00> : vector<64x32xf32>
    %2 = tpu.matmul %0, %1, %cst {dimension_numbers = #tpu.dot_dimension_numbers<[1], [0], [0], [1], [0, 0, 1, 1], [], []>} : vector<64x32xf32>, vector<32x32xf32>, vector<64x32xf32> -> vector<64x32xf32>
    %c0_3 = arith.constant 0 : index
    %c0_4 = arith.constant 0 : index
    %3 = vector.load %arg1[%c0_3, %c0_4] : memref<64x64xf32, #tpu.memory_space<vmem>>, vector<64x64xf32>
    %cst_5 = arith.constant dense<0.000000e+00> : vector<64x32xf32>
    %4 = tpu.matmul %3, %2, %cst_5 {dimension_numbers = #tpu.dot_dimension_numbers<[1], [0], [0], [1], [0, 0, 1, 1], [], []>} : vector<64x64xf32>, vector<64x32xf32>, vector<64x32xf32> -> vector<64x32xf32>
    %cst_6 = arith.constant 0.000000e+00 : f32
    %5 = vector.broadcast %cst_6 : f32 to vector<64x32xf32>
    %6 = arith.maximumf %4, %5 : vector<64x32xf32>
    %c0_7 = arith.constant 0 : index
    %c0_8 = arith.constant 0 : index
    %7 = vector.load %arg4[%c0_7, %c0_8] : memref<64x32xf32, #tpu.memory_space<vmem>>, vector<64x32xf32>
    %8 = arith.mulf %6, %7 : vector<64x32xf32>
    %c0_9 = arith.constant 0 : index
    %c0_10 = arith.constant 0 : index
    %9 = vector.load %arg3[%c0_9, %c0_10] : memref<32x8xf32, #tpu.memory_space<vmem>>, vector<32x8xf32>
    %cst_11 = arith.constant dense<0.000000e+00> : vector<64x8xf32>
    %10 = tpu.matmul %8, %9, %cst_11 {dimension_numbers = #tpu.dot_dimension_numbers<[1], [0], [0], [1], [0, 0, 1, 1], [], []>} : vector<64x32xf32>, vector<32x8xf32>, vector<64x8xf32> -> vector<64x8xf32>
    %c0_12 = arith.constant 0 : index
    %c0_13 = arith.constant 0 : index
    %11 = vector.load %arg1[%c0_12, %c0_13] : memref<64x64xf32, #tpu.memory_space<vmem>>, vector<64x64xf32>
    %cst_14 = arith.constant dense<0.000000e+00> : vector<64x8xf32>
    %12 = tpu.matmul %11, %10, %cst_14 {dimension_numbers = #tpu.dot_dimension_numbers<[1], [0], [0], [1], [0, 0, 1, 1], [], []>} : vector<64x64xf32>, vector<64x8xf32>, vector<64x8xf32> -> vector<64x8xf32>
    %cst_15 = arith.constant dense<0xFF800000> : vector<64xf32>
    %13 = vector.multi_reduction <maximumf>, %12, %cst_15 [1] : vector<64x8xf32> to vector<64xf32>
    %14 = vector.shape_cast %13 : vector<64xf32> to vector<64x1xf32>
    %15 = vector.broadcast %14 : vector<64x1xf32> to vector<64x8xf32>
    %16 = arith.subf %12, %15 : vector<64x8xf32>
    %17 = math.exp %16 : vector<64x8xf32>
    %cst_16 = arith.constant dense<0.000000e+00> : vector<64xf32>
    %18 = vector.multi_reduction <add>, %17, %cst_16 [1] : vector<64x8xf32> to vector<64xf32>
    %19 = vector.shape_cast %18 : vector<64xf32> to vector<64x1xf32>
    %20 = math.log %19 : vector<64x1xf32>
    %21 = vector.broadcast %20 : vector<64x1xf32> to vector<64x8xf32>
    %22 = arith.subf %16, %21 : vector<64x8xf32>
    %c0_17 = arith.constant 0 : index
    %c0_18 = arith.constant 0 : index
    %23 = vector.load %arg5[%c0_17, %c0_18] : memref<64x8xf32, #tpu.memory_space<vmem>>, vector<64x8xf32>
    tpu.vector_store %arg5[%c0_17, %c0_18], %22 {strides = array<i32>} : memref<64x8xf32, #tpu.memory_space<vmem>>, vector<64x8xf32>,
    return
  }
}

</mosaic_0001>

<llo_original>
// kernel: gcn_forward.3
$region0: #{gcn_forward.3}
  #allocation0 [shape = 'u32[]', space=smem, size = 0x4, offset = 0x4, fixed_abs, tag = 'smem constant byte address 0x4 - core index']
  #allocation1 [shape = 'u32[144,128]{1,0:T(1,128)}', space=vmem, size = 0x12000, scoped, tag = 'internal scratch']
  %s0 = inlined_call_operand.vmem [shape: f32[64,32], index: 0, kind: input, shape index: {}]
  %s1 = inlined_call_operand.vmem [shape: f32[64,64], index: 1, kind: input, shape index: {}]
  %s2 = inlined_call_operand.vmem [shape: f32[32,32], index: 2, kind: input, shape index: {}]
  %s3 = inlined_call_operand.vmem [shape: f32[32,8], index: 3, kind: input, shape index: {}]
  %s4 = inlined_call_operand.vmem [shape: f32[64,32], index: 4, kind: input, shape index: {}]
  %s5 = inlined_call_operand.vmem [shape: f32[64,8], index: 5, kind: output, shape index: {}]
  %s6 = sld [smem:[#allocation0]]
  $region30: #{gcn_forward.3} parent=0
    _
  %s8 = ssub.s32 1, %s6
  %s9 = scalar_select 0, %s8, %s6
  // Predicated region
  $region2: #{gcn_forward.3} parent=0 // pred_check
    _
  $region3: #{gcn_forward.3} parent=0 // pred_check_branch
    %11 = sbr.rel (0) target = $region5
  $region4: #{gcn_forward.3} parent=0 // pred_region
    _
  $region5: #{gcn_forward.3} parent=0 // pred_fallthru
    _
  // Predicated region
  $region6: #{gcn_forward.3} parent=0 // pred_check
    _
  $region7: #{gcn_forward.3} parent=0 // pred_check_branch
    %13 = sbr.rel (0) target = $region9
  $region8: #{gcn_forward.3} parent=0 // pred_region
    _
  $region9: #{gcn_forward.3} parent=0 // pred_fallthru
    _
  // Predicated region
  $region10: #{gcn_forward.3} parent=0 // pred_check
    _
  $region11: #{gcn_forward.3} parent=0 // pred_check_branch
    %15 = sbr.rel (0) target = $region13
  $region12: #{gcn_forward.3} parent=0 // pred_region
    _
  $region13: #{gcn_forward.3} parent=0 // pred_fallthru
    _
  // Predicated region
  $region14: #{gcn_forward.3} parent=0 // pred_check
    _
  $region15: #{gcn_forward.3} parent=0 // pred_check_branch
    %17 = sbr.rel (0) target = $region17
  $region16: #{gcn_forward.3} parent=0 // pred_region
    _
  $region17: #{gcn_forward.3} parent=0 // pred_fallthru
    _
  // Predicated region
  $region18: #{gcn_forward.3} parent=0 // pred_check
    _
  $region19: #{gcn_forward.3} parent=0 // pred_check_branch
    %19 = sbr.rel (0) target = $region21
  $region20: #{gcn_forward.3} parent=0 // pred_region
    _
  $region21: #{gcn_forward.3} parent=0 // pred_fallthru
    _
  %v20 = vld [vmem:[%s0] sm:$0xff]
  %v21 = vld [vmem:[%s0 + $0x8] sm:$0xff]
  %v22 = vld [vmem:[%s0 + $0x10] sm:$0xff]
  %v23 = vld [vmem:[%s0 + $0x18] sm:$0xff]
  %v24 = vld [vmem:[%s0 + $0x20] sm:$0xff]
  %v25 = vld [vmem:[%s0 + $0x28] sm:$0xff]
  %v26 = vld [vmem:[%s0 + $0x30] sm:$0xff]
  %v27 = vld [vmem:[%s0 + $0x38] sm:$0xff]
  %v28 = vld [vmem:[%s2] sm:$0xff]
  %v29 = vld [vmem:[%s2 + $0x8] sm:$0xff]
  %v30 = vld [vmem:[%s2 + $0x10] sm:$0xff]
  %v31 = vld [vmem:[%s2 + $0x18] sm:$0xff]
  %vm32 = vcmask 261120
  %v34 = vsel %vm32, %v20, 0
  %v37 = vsel %vm32, %v21, 0
  %v40 = vsel %vm32, %v22, 0
  %v43 = vsel %vm32, %v23, 0
  %v46 = vsel %vm32, %v24, 0
  %v49 = vsel %vm32, %v25, 0
  %v52 = vsel %vm32, %v26, 0
  %v55 = vsel %vm32, %v27, 0
  %57 = vmatprep.subr.mxu0 0.0
  %58 = vmatpush1.msra.mxu0 %v28
  %59 = vmatprep.subr.mxu0 0.0
  %60 = vmatpush1.msra.mxu0 %v29
  %61 = vmatprep.subr.mxu0 0.0
  %62 = vmatpush1.msra.mxu0 %v30
  %63 = vmatprep.subr.mxu0 0.0
  %64 = vmatpush1.msra.mxu0 %v31
  %65 = vmatprep.subr.mxu0 0.0
  %66 = vmatpush1.msra.mxu0 0.0
  %67 = vmatprep.subr.mxu0 0.0
  %68 = vmatpush1.msra.mxu0 0.0
  %69 = vmatprep.subr.mxu0 0.0
  %70 = vmatpush1.msra.mxu0 0.0
  %71 = vmatprep.subr.mxu0 0.0
  %72 = vmatpush1.msra.mxu0 0.0
  %73 = vmatprep.subr.mxu0 0.0
  %74 = vmatpush1.msra.mxu0 0.0
  %75 = vmatprep.subr.mxu0 0.0
  %76 = vmatpush1.msra.mxu0 0.0
  %77 = vmatprep.subr.mxu0 0.0
  %78 = vmatpush1.msra.mxu0 0.0
  %79 = vmatprep.subr.mxu0 0.0
  %80 = vmatpush1.msra.mxu0 0.0
  %81 = vmatprep.subr.mxu0 0.0
  %82 = vmatpush1.msra.mxu0 0.0
  %83 = vmatprep.subr.mxu0 0.0
  %84 = vmatpush1.msra.mxu0 0.0
  %85 = vmatprep.subr.mxu0 0.0
  %86 = vmatpush1.msra.mxu0 0.0
  %87 = vmatprep.subr.mxu0 0.0
  %88 = vmatpush1.msra.mxu0 0.0
  %89 = vmatprep.subr.mxu0 0.0
  %90 = vmatpush1.msra.mxu0 0.0
  %91 = vmatprep.subr.mxu0 0.0
  %92 = vmatpush1.msra.mxu0 0.0
  %93 = vmatprep.subr.mxu0 0.0
  %94 = vmatpush1.msra.mxu0 0.0
  %95 = vmatprep.subr.mxu0 0.0
  %96 = vmatpush1.msra.mxu0 0.0
  %97 = vmatprep.subr.mxu0 0.0
  %98 = vmatpush1.msra.mxu0 0.0
  %99 = vmatprep.subr.mxu0 0.0
  %100 = vmatpush1.msra.mxu0 0.0
  %101 = vmatprep.subr.mxu0 0.0
  %102 = vmatpush1.msra.mxu0 0.0
  %103 = vmatprep.subr.mxu0 0.0
  %104 = vmatpush1.msra.mxu0 0.0
  %105 = vmatprep.subr.mxu0 0.0
  %106 = vmatpush1.msra.mxu0 0.0
  %107 = vmatprep.subr.mxu0 0.0
  %108 = vmatpush1.msra.mxu0 0.0
  %109 = vmatprep.subr.mxu0 0.0
  %110 = vmatpush1.msra.mxu0 0.0
  %111 = vmatprep.subr.mxu0 0.0
  %112 = vmatpush1.msra.mxu0 0.0
  %113 = vmatprep.subr.mxu0 0.0
  %114 = vmatpush1.msra.mxu0 0.0
  %115 = vmatprep.subr.mxu0 0.0
  %116 = vmatpush1.msra.mxu0 0.0
  %117 = vmatprep.subr.mxu0 0.0
  %118 = vmatpush1.msra.mxu0 0.0
  %119 = vmatprep.subr.mxu0 0.0
  %120 = vmatpush1.msra.mxu0 0.0
  %121 = vmatprep.mubr.f32.mxu0 0.0
  %122 = vmatmul.mubr.f32.gmra.mrb[0].mxu0 %v34
  %v123 = vpop.f32.mrb[0].mxu0
  %v124 = vadd.f32 0.0, %v123
  %v125 = vpop.f32.mrb[0].mxu0
  %126 = vmatprep.mubr.f32.mxu0 0.0
  %127 = vmatmul.mubr.f32.gmra.mrb[0].mxu0 %v37
  %v128 = vpop.f32.mrb[0].mxu0
  %v129 = vadd.f32 0.0, %v128
  %v130 = vpop.f32.mrb[0].mxu0
  %131 = vmatprep.mubr.f32.mxu0 0.0
  %132 = vmatmul.mubr.f32.gmra.mrb[0].mxu0 %v40
  %v133 = vpop.f32.mrb[0].mxu0
  %v134 = vadd.f32 0.0, %v133
  %v135 = vpop.f32.mrb[0].mxu0
  %136 = vmatprep.mubr.f32.mxu0 0.0
  %137 = vmatmul.mubr.f32.gmra.mrb[0].mxu0 %v43
  %v138 = vpop.f32.mrb[0].mxu0
  %v139 = vadd.f32 0.0, %v138
  %v140 = vpop.f32.mrb[0].mxu0
  %141 = vmatprep.mubr.f32.mxu0 0.0
  %142 = vmatmul.mubr.f32.gmra.mrb[0].mxu0 %v46
  %v143 = vpop.f32.mrb[0].mxu0
  %v144 = vadd.f32 0.0, %v143
  %v145 = vpop.f32.mrb[0].mxu0
  %146 = vmatprep.mubr.f32.mxu0 0.0
  %147 = vmatmul.mubr.f32.gmra.mrb[0].mxu0 %v49
  %v148 = vpop.f32.mrb[0].mxu0
  %v149 = vadd.f32 0.0, %v148
  %v150 = vpop.f32.mrb[0].mxu0
  %151 = vmatprep.mubr.f32.mxu0 0.0
  %152 = vmatmul.mubr.f32.gmra.mrb[0].mxu0 %v52
  %v153 = vpop.f32.mrb[0].mxu0
  %v154 = vadd.f32 0.0, %v153
  %v155 = vpop.f32.mrb[0].mxu0
  %156 = vmatprep.mubr.f32.mxu0 0.0
  %157 = vmatmul.mubr.f32.gmra.mrb[0].mxu0 %v55
  %v158 = vpop.f32.mrb[0].mxu0
  %v159 = vadd.f32 0.0, %v158
  %v160 = vpop.f32.mrb[0].mxu0
  %161 = vdwg.mxu0
  %v162 = vld [vmem:[%s1] sm:$0xff]
  %v163 = vld [vmem:[%s1 + $0x8] sm:$0xff]
  %v164 = vld [vmem:[%s1 + $0x10] sm:$0xff]
  %v165 = vld [vmem:[%s1 + $0x18] sm:$0xff]
  %v166 = vld [vmem:[%s1 + $0x20] sm:$0xff]
  %v167 = vld [vmem:[%s1 + $0x28] sm:$0xff]
  %v168 = vld [vmem:[%s1 + $0x30] sm:$0xff]
  %v169 = vld [vmem:[%s1 + $0x38] sm:$0xff]
  %vm170 = vcmask 523264
  %v172 = vsel %vm170, %v162, 0
  %v175 = vsel %vm170, %v163, 0
  %v178 = vsel %vm170, %v164, 0
  %v181 = vsel %vm170, %v165, 0
  %v184 = vsel %vm170, %v166, 0
  %v187 = vsel %vm170, %v167, 0
  %v190 = vsel %vm170, %v168, 0
  %v193 = vsel %vm170, %v169, 0
  %195 = vmatprep.subr.mxu0 0.0
  %196 = vmatpush1.msra.mxu0 %v124
  %197 = vmatprep.subr.mxu0 0.0
  %198 = vmatpush1.msra.mxu0 %v129
  %199 = vmatprep.subr.mxu0 0.0
  %200 = vmatpush1.msra.mxu0 %v134
  %201 = vmatprep.subr.mxu0 0.0
  %202 = vmatpush1.msra.mxu0 %v139
  %203 = vmatprep.subr.mxu0 0.0
  %204 = vmatpush1.msra.mxu0 %v144
  %205 = vmatprep.subr.mxu0 0.0
  %206 = vmatpush1.msra.mxu0 %v149
  %207 = vmatprep.subr.mxu0 0.0
  %208 = vmatpush1.msra.mxu0 %v154
  %209 = vmatprep.subr.mxu0 0.0
  %210 = vmatpush1.msra.mxu0 %v159
  %211 = vmatprep.subr.mxu0 0.0
  %212 = vmatpush1.msra.mxu0 0.0
  %213 = vmatprep.subr.mxu0 0.0
  %214 = vmatpush1.msra.mxu0 0.0
  %215 = vmatprep.subr.mxu0 0.0
  %216 = vmatpush1.msra.mxu0 0.0
  %217 = vmatprep.subr.mxu0 0.0
  %218 = vmatpush1.msra.mxu0 0.0
  %219 = vmatprep.subr.mxu0 0.0
  %220 = vmatpush1.msra.mxu0 0.0
  %221 = vmatprep.subr.mxu0 0.0
  %222 = vmatpush1.msra.mxu0 0.0
  %223 = vmatprep.subr.mxu0 0.0
  %224 = vmatpush1.msra.mxu0 0.0
  %225 = vmatprep.subr.mxu0 0.0
  %226 = vmatpush1.msra.mxu0 0.0
  %227 = vmatprep.subr.mxu0 0.0
  %228 = vmatpush1.msra.mxu0 0.0
  %229 = vmatprep.subr.mxu0 0.0
  %230 = vmatpush1.msra.mxu0 0.0
  %231 = vmatprep.subr.mxu0 0.0
  %232 = vmatpush1.msra.mxu0 0.0
  %233 = vmatprep.subr.mxu0 0.0
  %234 = vmatpush1.msra.mxu0 0.0
  %235 = vmatprep.subr.mxu0 0.0
  %236 = vmatpush1.msra.mxu0 0.0
  %237 = vmatprep.subr.mxu0 0.0
  %238 = vmatpush1.msra.mxu0 0.0
  %239 = vmatprep.subr.mxu0 0.0
  %240 = vmatpush1.msra.mxu0 0.0
  %241 = vmatprep.subr.mxu0 0.0
  %242 = vmatpush1.msra.mxu0 0.0
  %243 = vmatprep.subr.mxu0 0.0
  %244 = vmatpush1.msra.mxu0 0.0
  %245 = vmatprep.subr.mxu0 0.0
  %246 = vmatpush1.msra.mxu0 0.0
  %247 = vmatprep.subr.mxu0 0.0
  %248 = vmatpush1.msra.mxu0 0.0
  %249 = vmatprep.subr.mxu0 0.0
  %250 = vmatpush1.msra.mxu0 0.0
  %251 = vmatprep.subr.mxu0 0.0
  %252 = vmatpush1.msra.mxu0 0.0
  %253 = vmatprep.subr.mxu0 0.0
  %254 = vmatpush1.msra.mxu0 0.0
  %255 = vmatprep.subr.mxu0 0.0
  %256 = vmatpush1.msra.mxu0 0.0
  %257 = vmatprep.subr.mxu0 0.0
  %258 = vmatpush1.msra.mxu0 0.0
  %259 = vmatprep.mubr.f32.mxu0 0.0
  %260 = vmatmul.mubr.f32.gmra.mrb[0].mxu0 %v172
  %v261 = vpop.f32.mrb[0].mxu0
  %v262 = vadd.f32 0.0, %v261
  %v263 = vpop.f32.mrb[0].mxu0
  %264 = vmatprep.mubr.f32.mxu0 0.0
  %265 = vmatmul.mubr.f32.gmra.mrb[0].mxu0 %v175
  %v266 = vpop.f32.mrb[0].mxu0
  %v267 = vadd.f32 0.0, %v266
  %v268 = vpop.f32.mrb[0].mxu0
  %269 = vmatprep.mubr.f32.mxu0 0.0
  %270 = vmatmul.mubr.f32.gmra.mrb[0].mxu0 %v178
  %v271 = vpop.f32.mrb[0].mxu0
  %v272 = vadd.f32 0.0, %v271
  %v273 = vpop.f32.mrb[0].mxu0
  %274 = vmatprep.mubr.f32.mxu0 0.0
  %275 = vmatmul.mubr.f32.gmra.mrb[0].mxu0 %v181
  %v276 = vpop.f32.mrb[0].mxu0
  %v277 = vadd.f32 0.0, %v276
  %v278 = vpop.f32.mrb[0].mxu0
  %279 = vmatprep.mubr.f32.mxu0 0.0
  %280 = vmatmul.mubr.f32.gmra.mrb[0].mxu0 %v184
  %v281 = vpop.f32.mrb[0].mxu0
  %v282 = vadd.f32 0.0, %v281
  %v283 = vpop.f32.mrb[0].mxu0
  %284 = vmatprep.mubr.f32.mxu0 0.0
  %285 = vmatmul.mubr.f32.gmra.mrb[0].mxu0 %v187
  %v286 = vpop.f32.mrb[0].mxu0
  %v287 = vadd.f32 0.0, %v286
  %v288 = vpop.f32.mrb[0].mxu0
  %289 = vmatprep.mubr.f32.mxu0 0.0
  %290 = vmatmul.mubr.f32.gmra.mrb[0].mxu0 %v190
  %v291 = vpop.f32.mrb[0].mxu0
  %v292 = vadd.f32 0.0, %v291
  %v293 = vpop.f32.mrb[0].mxu0
  %294 = vmatprep.mubr.f32.mxu0 0.0
  %295 = vmatmul.mubr.f32.gmra.mrb[0].mxu0 %v193
  %v296 = vpop.f32.mrb[0].mxu0
  %v297 = vadd.f32 0.0, %v296
  %v298 = vpop.f32.mrb[0].mxu0
  %299 = vdwg.mxu0
  %v300 = vmax.f32 %v262, 0.0
  %v301 = vmax.f32 %v267, 0.0
  %v302 = vmax.f32 %v272, 0.0
  %v303 = vmax.f32 %v277, 0.0
  %v304 = vmax.f32 %v282, 0.0
  %v305 = vmax.f32 %v287, 0.0
  %v306 = vmax.f32 %v292, 0.0
  %v307 = vmax.f32 %v297, 0.0
  %v308 = vld [vmem:[%s4] sm:$0xff]
  %v309 = vld [vmem:[%s4 + $0x8] sm:$0xff]
  %v310 = vld [vmem:[%s4 + $0x10] sm:$0xff]
  %v311 = vld [vmem:[%s4 + $0x18] sm:$0xff]
  %v312 = vld [vmem:[%s4 + $0x20] sm:$0xff]
  %v313 = vld [vmem:[%s4 + $0x28] sm:$0xff]
  %v314 = vld [vmem:[%s4 + $0x30] sm:$0xff]
  %v315 = vld [vmem:[%s4 + $0x38] sm:$0xff]
  %v316 = vmul.f32 %v300, %v308
  %v317 = vmul.f32 %v301, %v309
  %v318 = vmul.f32 %v302, %v310
  %v319 = vmul.f32 %v303, %v311
  %v320 = vmul.f32 %v304, %v312
  %v321 = vmul.f32 %v305, %v313
  %v322 = vmul.f32 %v306, %v314
  %v323 = vmul.f32 %v307, %v315
  %v324 = vld [vmem:[%s3] sm:$0xff]
  %v325 = vld [vmem:[%s3 + $0x8] sm:$0xff]
  %v326 = vld [vmem:[%s3 + $0x10] sm:$0xff]
  %v327 = vld [vmem:[%s3 + $0x18] sm:$0xff]
  %v329 = vsel %vm32, %v316, 0
  %v332 = vsel %vm32, %v317, 0
  %v335 = vsel %vm32, %v318, 0
  %v338 = vsel %vm32, %v319, 0
  %v341 = vsel %vm32, %v320, 0
  %v344 = vsel %vm32, %v321, 0
  %v347 = vsel %vm32, %v322, 0
  %v350 = vsel %vm32, %v323, 0
  %352 = vmatprep.subr.mxu0 0.0
  %353 = vmatpush1.msra.mxu0 %v324
  %354 = vmatprep.subr.mxu0 0.0
  %355 = vmatpush1.msra.mxu0 %v325
  %356 = vmatprep.subr.mxu0 0.0
  %357 = vmatpush1.msra.mxu0 %v326
  %358 = vmatprep.subr.mxu0 0.0
  %359 = vmatpush1.msra.mxu0 %v327
  %360 = vmatprep.subr.mxu0 0.0
  %361 = vmatpush1.msra.mxu0 0.0
  %362 = vmatprep.subr.mxu0 0.0
  %363 = vmatpush1.msra.mxu0 0.0
  %364 = vmatprep.subr.mxu0 0.0
  %365 = vmatpush1.msra.mxu0 0.0
  %366 = vmatprep.subr.mxu0 0.0
  %367 = vmatpush1.msra.mxu0 0.0
  %368 = vmatprep.subr.mxu0 0.0
  %369 = vmatpush1.msra.mxu0 0.0
  %370 = vmatprep.subr.mxu0 0.0
  %371 = vmatpush1.msra.mxu0 0.0
  %372 = vmatprep.subr.mxu0 0.0
  %373 = vmatpush1.msra.mxu0 0.0
  %374 = vmatprep.subr.mxu0 0.0
  %375 = vmatpush1.msra.mxu0 0.0
  %376 = vmatprep.subr.mxu0 0.0
  %377 = vmatpush1.msra.mxu0 0.0
  %378 = vmatprep.subr.mxu0 0.0
  %379 = vmatpush1.msra.mxu0 0.0
  %380 = vmatprep.subr.mxu0 0.0
  %381 = vmatpush1.msra.mxu0 0.0
  %382 = vmatprep.subr.mxu0 0.0
  %383 = vmatpush1.msra.mxu0 0.0
  %384 = vmatprep.subr.mxu0 0.0
  %385 = vmatpush1.msra.mxu0 0.0
  %386 = vmatprep.subr.mxu0 0.0
  %387 = vmatpush1.msra.mxu0 0.0
  %388 = vmatprep.subr.mxu0 0.0
  %389 = vmatpush1.msra.mxu0 0.0
  %390 = vmatprep.subr.mxu0 0.0
  %391 = vmatpush1.msra.mxu0 0.0
  %392 = vmatprep.subr.mxu0 0.0
  %393 = vmatpush1.msra.mxu0 0.0
  %394 = vmatprep.subr.mxu0 0.0
  %395 = vmatpush1.msra.mxu0 0.0
  %396 = vmatprep.subr.mxu0 0.0
  %397 = vmatpush1.msra.mxu0 0.0
  %398 = vmatprep.subr.mxu0 0.0
  %399 = vmatpush1.msra.mxu0 0.0
  %400 = vmatprep.subr.mxu0 0.0
  %401 = vmatpush1.msra.mxu0 0.0
  %402 = vmatprep.subr.mxu0 0.0
  %403 = vmatpush1.msra.mxu0 0.0
  %404 = vmatprep.subr.mxu0 0.0
  %405 = vmatpush1.msra.mxu0 0.0
  %406 = vmatprep.subr.mxu0 0.0
  %407 = vmatpush1.msra.mxu0 0.0
  %408 = vmatprep.subr.mxu0 0.0
  %409 = vmatpush1.msra.mxu0 0.0
  %410 = vmatprep.subr.mxu0 0.0
  %411 = vmatpush1.msra.mxu0 0.0
  %412 = vmatprep.subr.mxu0 0.0
  %413 = vmatpush1.msra.mxu0 0.0
  %414 = vmatprep.subr.mxu0 0.0
  %415 = vmatpush1.msra.mxu0 0.0
  %416 = vmatprep.mubr.f32.mxu0 0.0
  %417 = vmatmul.mubr.f32.gmra.mrb[0].mxu0 %v329
  %v418 = vpop.f32.mrb[0].mxu0
  %v419 = vadd.f32 0.0, %v418
  %v420 = vpop.f32.mrb[0].mxu0
  %421 = vmatprep.mubr.f32.mxu0 0.0
  %422 = vmatmul.mubr.f32.gmra.mrb[0].mxu0 %v332
  %v423 = vpop.f32.mrb[0].mxu0
  %v424 = vadd.f32 0.0, %v423
  %v425 = vpop.f32.mrb[0].mxu0
  %426 = vmatprep.mubr.f32.mxu0 0.0
  %427 = vmatmul.mubr.f32.gmra.mrb[0].mxu0 %v335
  %v428 = vpop.f32.mrb[0].mxu0
  %v429 = vadd.f32 0.0, %v428
  %v430 = vpop.f32.mrb[0].mxu0
  %431 = vmatprep.mubr.f32.mxu0 0.0
  %432 = vmatmul.mubr.f32.gmra.mrb[0].mxu0 %v338
  %v433 = vpop.f32.mrb[0].mxu0
  %v434 = vadd.f32 0.0, %v433
  %v435 = vpop.f32.mrb[0].mxu0
  %436 = vmatprep.mubr.f32.mxu0 0.0
  %437 = vmatmul.mubr.f32.gmra.mrb[0].mxu0 %v341
  %v438 = vpop.f32.mrb[0].mxu0
  %v439 = vadd.f32 0.0, %v438
  %v440 = vpop.f32.mrb[0].mxu0
  %441 = vmatprep.mubr.f32.mxu0 0.0
  %442 = vmatmul.mubr.f32.gmra.mrb[0].mxu0 %v344
  %v443 = vpop.f32.mrb[0].mxu0
  %v444 = vadd.f32 0.0, %v443
  %v445 = vpop.f32.mrb[0].mxu0
  %446 = vmatprep.mubr.f32.mxu0 0.0
  %447 = vmatmul.mubr.f32.gmra.mrb[0].mxu0 %v347
  %v448 = vpop.f32.mrb[0].mxu0
  %v449 = vadd.f32 0.0, %v448
  %v450 = vpop.f32.mrb[0].mxu0
  %451 = vmatprep.mubr.f32.mxu0 0.0
  %452 = vmatmul.mubr.f32.gmra.mrb[0].mxu0 %v350
  %v453 = vpop.f32.mrb[0].mxu0
  %v454 = vadd.f32 0.0, %v453
  %v455 = vpop.f32.mrb[0].mxu0
  %456 = vdwg.mxu0
  %457 = vmatprep.subr.mxu0 0.0
  %458 = vmatpush1.msra.mxu0 %v419
  %459 = vmatprep.subr.mxu0 0.0
  %460 = vmatpush1.msra.mxu0 %v424
  %461 = vmatprep.subr.mxu0 0.0
  %462 = vmatpush1.msra.mxu0 %v429
  %463 = vmatprep.subr.mxu0 0.0
  %464 = vmatpush1.msra.mxu0 %v434
  %465 = vmatprep.subr.mxu0 0.0
  %466 = vmatpush1.msra.mxu0 %v439
  %467 = vmatprep.subr.mxu0 0.0
  %468 = vmatpush1.msra.mxu0 %v444
  %469 = vmatprep.subr.mxu0 0.0
  %470 = vmatpush1.msra.mxu0 %v449
  %471 = vmatprep.subr.mxu0 0.0
  %472 = vmatpush1.msra.mxu0 %v454
  %473 = vmatprep.subr.mxu0 0.0
  %474 = vmatpush1.msra.mxu0 0.0
  %475 = vmatprep.subr.mxu0 0.0
  %476 = vmatpush1.msra.mxu0 0.0
  %477 = vmatprep.subr.mxu0 0.0
  %478 = vmatpush1.msra.mxu0 0.0
  %479 = vmatprep.subr.mxu0 0.0
  %480 = vmatpush1.msra.mxu0 0.0
  %481 = vmatprep.subr.mxu0 0.0
  %482 = vmatpush1.msra.mxu0 0.0
  %483 = vmatprep.subr.mxu0 0.0
  %484 = vmatpush1.msra.mxu0 0.0
  %485 = vmatprep.subr.mxu0 0.0
  %486 = vmatpush1.msra.mxu0 0.0
  %487 = vmatprep.subr.mxu0 0.0
  %488 = vmatpush1.msra.mxu0 0.0
  %489 = vmatprep.subr.mxu0 0.0
  %490 = vmatpush1.msra.mxu0 0.0
  %491 = vmatprep.subr.mxu0 0.0
  %492 = vmatpush1.msra.mxu0 0.0
  %493 = vmatprep.subr.mxu0 0.0
  %494 = vmatpush1.msra.mxu0 0.0
  %495 = vmatprep.subr.mxu0 0.0
  %496 = vmatpush1.msra.mxu0 0.0
  %497 = vmatprep.subr.mxu0 0.0
  %498 = vmatpush1.msra.mxu0 0.0
  %499 = vmatprep.subr.mxu0 0.0
  %500 = vmatpush1.msra.mxu0 0.0
  %501 = vmatprep.subr.mxu0 0.0
  %502 = vmatpush1.msra.mxu0 0.0
  %503 = vmatprep.subr.mxu0 0.0
  %504 = vmatpush1.msra.mxu0 0.0
  %505 = vmatprep.subr.mxu0 0.0
  %506 = vmatpush1.msra.mxu0 0.0
  %507 = vmatprep.subr.mxu0 0.0
  %508 = vmatpush1.msra.mxu0 0.0
  %509 = vmatprep.subr.mxu0 0.0
  %510 = vmatpush1.msra.mxu0 0.0
  %511 = vmatprep.subr.mxu0 0.0
  %512 = vmatpush1.msra.mxu0 0.0
  %513 = vmatprep.subr.mxu0 0.0
  %514 = vmatpush1.msra.mxu0 0.0
  %515 = vmatprep.subr.mxu0 0.0
  %516 = vmatpush1.msra.mxu0 0.0
  %517 = vmatprep.subr.mxu0 0.0
  %518 = vmatpush1.msra.mxu0 0.0
  %519 = vmatprep.subr.mxu0 0.0
  %520 = vmatpush1.msra.mxu0 0.0
  %521 = vmatprep.mubr.f32.mxu0 0.0
  %522 = vmatmul.mubr.f32.gmra.mrb[0].mxu0 %v172
  %v523 = vpop.f32.mrb[0].mxu0
  %v524 = vadd.f32 0.0, %v523
  %v525 = vpop.f32.mrb[0].mxu0
  %526 = vmatprep.mubr.f32.mxu0 0.0
  %527 = vmatmul.mubr.f32.gmra.mrb[0].mxu0 %v175
  %v528 = vpop.f32.mrb[0].mxu0
  %v529 = vadd.f32 0.0, %v528
  %v530 = vpop.f32.mrb[0].mxu0
  %531 = vmatprep.mubr.f32.mxu0 0.0
  %532 = vmatmul.mubr.f32.gmra.mrb[0].mxu0 %v178
  %v533 = vpop.f32.mrb[0].mxu0
  %v534 = vadd.f32 0.0, %v533
  %v535 = vpop.f32.mrb[0].mxu0
  %536 = vmatprep.mubr.f32.mxu0 0.0
  %537 = vmatmul.mubr.f32.gmra.mrb[0].mxu0 %v181
  %v538 = vpop.f32.mrb[0].mxu0
  %v539 = vadd.f32 0.0, %v538
  %v540 = vpop.f32.mrb[0].mxu0
  %541 = vmatprep.mubr.f32.mxu0 0.0
  %542 = vmatmul.mubr.f32.gmra.mrb[0].mxu0 %v184
  %v543 = vpop.f32.mrb[0].mxu0
  %v544 = vadd.f32 0.0, %v543
  %v545 = vpop.f32.mrb[0].mxu0
  %546 = vmatprep.mubr.f32.mxu0 0.0
  %547 = vmatmul.mubr.f32.gmra.mrb[0].mxu0 %v187
  %v548 = vpop.f32.mrb[0].mxu0
  %v549 = vadd.f32 0.0, %v548
  %v550 = vpop.f32.mrb[0].mxu0
  %551 = vmatprep.mubr.f32.mxu0 0.0
  %552 = vmatmul.mubr.f32.gmra.mrb[0].mxu0 %v190
  %v553 = vpop.f32.mrb[0].mxu0
  %v554 = vadd.f32 0.0, %v553
  %v555 = vpop.f32.mrb[0].mxu0
  %556 = vmatprep.mubr.f32.mxu0 0.0
  %557 = vmatmul.mubr.f32.gmra.mrb[0].mxu0 %v193
  %v558 = vpop.f32.mrb[0].mxu0
  %v559 = vadd.f32 0.0, %v558
  %v560 = vpop.f32.mrb[0].mxu0
  %561 = vdwg.mxu0
  %vm562 = vcmask 64512
  %v563 = vsel %vm562, %v524, -inf
  %564 = vmax.xlane.f32.xlu0 %v563
  %v565 = vpop.xlane.xlu0 %564
  %v566 = vsel %vm562, %v529, -inf
  %567 = vmax.xlane.f32.xlu0 %v566
  %v568 = vpop.xlane.xlu0 %567
  %v569 = vsel %vm562, %v534, -inf
  %570 = vmax.xlane.f32.xlu0 %v569
  %v571 = vpop.xlane.xlu0 %570
  %v572 = vsel %vm562, %v539, -inf
  %573 = vmax.xlane.f32.xlu0 %v572
  %v574 = vpop.xlane.xlu0 %573
  %v575 = vsel %vm562, %v544, -inf
  %576 = vmax.xlane.f32.xlu0 %v575
  %v577 = vpop.xlane.xlu0 %576
  %v578 = vsel %vm562, %v549, -inf
  %579 = vmax.xlane.f32.xlu0 %v578
  %v580 = vpop.xlane.xlu0 %579
  %v581 = vsel %vm562, %v554, -inf
  %582 = vmax.xlane.f32.xlu0 %v581
  %v583 = vpop.xlane.xlu0 %582
  %v584 = vsel %vm562, %v559, -inf
  %585 = vmax.xlane.f32.xlu0 %v584
  %v586 = vpop.xlane.xlu0 %585
  %v587 = vsub.f32 %v524, %v565
  %v588 = vsub.f32 %v529, %v568
  %v589 = vsub.f32 %v534, %v571
  %v590 = vsub.f32 %v539, %v574
  %v591 = vsub.f32 %v544, %v577
  %v592 = vsub.f32 %v549, %v580
  %v593 = vsub.f32 %v554, %v583
  %v594 = vsub.f32 %v559, %v586
  %v595 = vmul.f32 %v587, 1.442695
  %v596 = vpow.pop %v595
  %v597 = vmul.f32 %v588, 1.442695
  %v598 = vpow.pop %v597
  %v599 = vmul.f32 %v589, 1.442695
  %v600 = vpow.pop %v599
  %v601 = vmul.f32 %v590, 1.442695
  %v602 = vpow.pop %v601
  %v603 = vmul.f32 %v591, 1.442695
  %v604 = vpow.pop %v603
  %v605 = vmul.f32 %v592, 1.442695
  %v606 = vpow.pop %v605
  %v607 = vmul.f32 %v593, 1.442695
  %v608 = vpow.pop %v607
  %v609 = vmul.f32 %v594, 1.442695
  %v610 = vpow.pop %v609
  %v611 = vsel %vm562, %v596, 0.0
  %612 = vadd.xlane.f32.xlu0 %v611
  %v613 = vpop.xlane.xlu0 %612
  %v614 = vsel %vm562, %v598, 0.0
  %615 = vadd.xlane.f32.xlu0 %v614
  %v616 = vpop.xlane.xlu0 %615
  %v617 = vsel %vm562, %v600, 0.0
  %618 = vadd.xlane.f32.xlu0 %v617
  %v619 = vpop.xlane.xlu0 %618
  %v620 = vsel %vm562, %v602, 0.0
  %621 = vadd.xlane.f32.xlu0 %v620
  %v622 = vpop.xlane.xlu0 %621
  %v623 = vsel %vm562, %v604, 0.0
  %624 = vadd.xlane.f32.xlu0 %v623
  %v625 = vpop.xlane.xlu0 %624
  %v626 = vsel %vm562, %v606, 0.0
  %627 = vadd.xlane.f32.xlu0 %v626
  %v628 = vpop.xlane.xlu0 %627
  %v629 = vsel %vm562, %v608, 0.0
  %630 = vadd.xlane.f32.xlu0 %v629
  %v631 = vpop.xlane.xlu0 %630
  %v632 = vsel %vm562, %v610, 0.0
  %633 = vadd.xlane.f32.xlu0 %v632
  %v634 = vpop.xlane.xlu0 %633
  %v635 = vlog2.pop %v613
  %v636 = vmul.f32 %v635, 0.6931472
  %v637 = vlog2.pop %v616
  %v638 = vmul.f32 %v637, 0.6931472
  %v639 = vlog2.pop %v619
  %v640 = vmul.f32 %v639, 0.6931472
  %v641 = vlog2.pop %v622
  %v642 = vmul.f32 %v641, 0.6931472
  %v643 = vlog2.pop %v625
  %v644 = vmul.f32 %v643, 0.6931472
  %v645 = vlog2.pop %v628
  %v646 = vmul.f32 %v645, 0.6931472
  %v647 = vlog2.pop %v631
  %v648 = vmul.f32 %v647, 0.6931472
  %v649 = vlog2.pop %v634
  %v650 = vmul.f32 %v649, 0.6931472
  %v651 = vsub.f32 %v587, %v636
  %v652 = vsub.f32 %v588, %v638
  %v653 = vsub.f32 %v589, %v640
  %v654 = vsub.f32 %v590, %v642
  %v655 = vsub.f32 %v591, %v644
  %v656 = vsub.f32 %v592, %v646
  %v657 = vsub.f32 %v593, %v648
  %v658 = vsub.f32 %v594, %v650
  %659 = vst.msk [vmem:[%s5] sm:$0xff] %vm562, %v651
  %660 = vst.msk [vmem:[%s5 + $0x8] sm:$0xff] %vm562, %v652
  %661 = vst.msk [vmem:[%s5 + $0x10] sm:$0xff] %vm562, %v653
  %662 = vst.msk [vmem:[%s5 + $0x18] sm:$0xff] %vm562, %v654
  %663 = vst.msk [vmem:[%s5 + $0x20] sm:$0xff] %vm562, %v655
  %664 = vst.msk [vmem:[%s5 + $0x28] sm:$0xff] %vm562, %v656
  %665 = vst.msk [vmem:[%s5 + $0x30] sm:$0xff] %vm562, %v657
  %666 = vst.msk [vmem:[%s5 + $0x38] sm:$0xff] %vm562, %v658
  // Predicated region
  $region22: #{gcn_forward.3} parent=0 // pred_check
    _
  $region23: #{gcn_forward.3} parent=0 // pred_check_branch
    %668 = sbr.rel (0) target = $region25
  $region24: #{gcn_forward.3} parent=0 // pred_region
    _
  $region25: #{gcn_forward.3} parent=0 // pred_fallthru
    _
  // Predicated region
  $region26: #{gcn_forward.3} parent=0 // pred_check
    _
  $region27: #{gcn_forward.3} parent=0 // pred_check_branch
    %670 = sbr.rel (0) target = $region29
  $region28: #{gcn_forward.3} parent=0 // pred_region
    _
  $region29: #{gcn_forward.3} parent=0 // pred_fallthru
    _

</llo_original>
